<compile_context>
chip_gen: v7x
topology: tpu7x:2x2x1
jax: 0.10.0
libtpu: 0.0.40
codegen_flags: <defaults>
</compile_context>

<pallas_src>
import jax
import jax.numpy as jnp
from jax.experimental import pallas as pl
from jax.experimental.pallas import tpu as pltpu


# ---------------------------------------------------------------------------
# Kernel: single fused linear head  out = x @ W_fused + b_fused
# ---------------------------------------------------------------------------
def _fused_head_kernel(x_ref, w_ref, b_ref, out_ref):
    out_ref[...] = (
        jnp.dot(x_ref[...], w_ref[...], preferred_element_type=jnp.float32)
        + b_ref[...]
    )


# ---------------------------------------------------------------------------
# One-time parameter preparation (hoisted out of the forward call path).
# ---------------------------------------------------------------------------
def prepare_params(w_critic, b_critic, w_actor, b_actor):
    """Fuse the critic and actor heads into one pre-transposed weight/bias.

    w_critic: (1, H), b_critic: (1,), w_actor: (A, H), b_actor: (A,)
    (PyTorch nn.Linear layout). Returns (w_fused (H, 1+A), b_fused (1, 1+A)).
    """
    w_fused = jnp.concatenate(
        [jnp.transpose(w_critic), jnp.transpose(w_actor)], axis=1
    ).astype(jnp.float32)
    b_fused = jnp.concatenate(
        [b_critic.reshape(1, -1), b_actor.reshape(1, -1)], axis=1
    ).astype(jnp.float32)
    return w_fused, b_fused


# ---------------------------------------------------------------------------
# Pallas paths
# ---------------------------------------------------------------------------
_TB = 512            # batch tile for the gridded (large-batch) path
_NO_GRID_MAX_B = 1024  # up to this many rows: single grid-free invocation


def _fused_pallas_no_grid(x, w_fused, b_fused):
    """Grid-free path: whole arrays live in VMEM, one kernel invocation."""
    B, _ = x.shape
    out_dim = w_fused.shape[1]
    vmem = pl.BlockSpec(memory_space=pltpu.MemorySpace.VMEM)
    return pl.pallas_call(
        _fused_head_kernel,
        out_shape=jax.ShapeDtypeStruct((B, out_dim), jnp.float32),
        in_specs=[vmem, vmem, vmem],
        out_specs=pl.BlockSpec(memory_space=pltpu.MemorySpace.VMEM),
    )(x, w_fused, b_fused)


def _fused_pallas_tiled(x, w_fused, b_fused, tb):
    """Batch-tiled path: B is a multiple of tb (tb multiple of 8)."""
    B, H = x.shape
    out_dim = w_fused.shape[1]
    return pl.pallas_call(
        _fused_head_kernel,
        out_shape=jax.ShapeDtypeStruct((B, out_dim), jnp.float32),
        grid=(B // tb,),
        in_specs=[
            pl.BlockSpec((tb, H), lambda i: (i, 0)),
            pl.BlockSpec((H, out_dim), lambda i: (0, 0)),
            pl.BlockSpec((1, out_dim), lambda i: (0, 0)),
        ],
        out_specs=pl.BlockSpec((tb, out_dim), lambda i: (i, 0)),
        compiler_params=pltpu.CompilerParams(
            dimension_semantics=("parallel",),
        ),
    )(x, w_fused, b_fused)


# ---------------------------------------------------------------------------
# Forward wrapper (matches the PyTorch module semantics).
# ---------------------------------------------------------------------------
def adaptive_actor_critic_forward(state, w_fused, b_fused, *,
                                  min_pallas_batch=256):
    """state: (B, H) or (H,). Returns (critic (..., 1), actor (..., A))."""
    squeeze = state.ndim == 1
    if squeeze:
        state = state[None, :]
    state = state.astype(jnp.float32)
    B, _ = state.shape

    if B < min_pallas_batch:
        # Tiny-batch fast path: plain XLA fuses this trivially; a custom call
        # launch would dominate the ~B*H*(1+A) FLOPs.
        fused = state @ w_fused + b_fused
    elif B <= _NO_GRID_MAX_B:
        fused = _fused_pallas_no_grid(state, w_fused, b_fused)
    else:
        b_pad = pl.cdiv(B, _TB) * _TB
        if b_pad != B:
            state = jnp.pad(state, ((0, b_pad - B), (0, 0)))
        fused = _fused_pallas_tiled(state, w_fused, b_fused, _TB)[:B]

    critic = fused[..., :1]
    actor = fused[..., 1:]
    if squeeze:
        critic, actor = critic[0], actor[0]
    return critic, actor


# ---------------------------------------------------------------------------
# Param init matching nn.Linear default: U(-1/sqrt(H), 1/sqrt(H)).
# ---------------------------------------------------------------------------
def init_params(key, max_beam_size, action_space=3):
    hidden_size = max_beam_size * 2 + 1
    bound = 1.0 / jnp.sqrt(jnp.float32(hidden_size))
    k1, k2, k3, k4 = jax.random.split(key, 4)
    w_critic = jax.random.uniform(k1, (1, hidden_size), jnp.float32, -bound, bound)
    b_critic = jax.random.uniform(k2, (1,), jnp.float32, -bound, bound)
    w_actor = jax.random.uniform(k3, (action_space, hidden_size), jnp.float32, -bound, bound)
    b_actor = jax.random.uniform(k4, (action_space,), jnp.float32, -bound, bound)
    return w_critic, b_critic, w_actor, b_actor


if __name__ == "__main__":
    max_beam_size = 8
    action_space = 3
    hidden_size = max_beam_size * 2 + 1  # 17

    key = jax.random.PRNGKey(0)
    kp, kx_small, kx_large = jax.random.split(key, 3)
    w_critic, b_critic, w_actor, b_actor = init_params(kp, max_beam_size, action_space)

    # One-time (hoisted) parameter prep.
    w_fused, b_fused = prepare_params(w_critic, b_critic, w_actor, b_actor)

    def reference(x):
        return x @ w_critic.T + b_critic, x @ w_actor.T + b_actor

    # --- Case 1: tiny batch (module's typical use): grid-free Pallas kernel,
    #     forced on so the kernel is exercised (min_pallas_batch=0). ----------
    state_small = jax.random.normal(kx_small, (2, hidden_size), jnp.float32)
    critic_s, actor_s = adaptive_actor_critic_forward(
        state_small, w_fused, b_fused, min_pallas_batch=0)
    jax.block_until_ready((critic_s, actor_s))
    cr, ar = reference(state_small)
    assert critic_s.shape == (2, 1) and actor_s.shape == (2, action_space)
    assert jnp.allclose(critic_s, cr, atol=1e-4, rtol=1e-4)
    assert jnp.allclose(actor_s, ar, atol=1e-4, rtol=1e-4)

    # --- Case 2: larger batch: batch-tiled, "parallel" grid path (with batch
    #     padding exercised: 1100 -> 1536 rows, 3 tiles of 512). --------------
    state_large = jax.random.normal(kx_large, (1100 + _NO_GRID_MAX_B, 1), jnp.float32)
    state_large = jax.random.normal(kx_large, (1100 + _NO_GRID_MAX_B, hidden_size),
                                    jnp.float32)
    critic_l, actor_l = adaptive_actor_critic_forward(
        state_large, w_fused, b_fused)
    jax.block_until_ready((critic_l, actor_l))
    cr_l, ar_l = reference(state_large)
    assert critic_l.shape == (state_large.shape[0], 1)
    assert actor_l.shape == (state_large.shape[0], action_space)
    assert jnp.allclose(critic_l, cr_l, atol=1e-4, rtol=1e-4)
    assert jnp.allclose(actor_l, ar_l, atol=1e-4, rtol=1e-4)

    # --- Case 3: default dispatch at tiny batch uses the plain-JAX fast path. -
    critic_fp, actor_fp = adaptive_actor_critic_forward(
        state_small, w_fused, b_fused)
    jax.block_until_ready((critic_fp, actor_fp))
    assert jnp.allclose(critic_fp, cr, atol=1e-5)
    assert jnp.allclose(actor_fp, ar, atol=1e-5)

    print("KERNEL_OK")
</pallas_src>

<mosaic_0001>
module attributes {stable_mosaic.version = 11 : i64} {
  func.func @_fused_head_kernel(%arg0: memref<2x17xf32, #tpu.memory_space<vmem>>, %arg1: memref<17x4xf32, #tpu.memory_space<vmem>>, %arg2: memref<1x4xf32, #tpu.memory_space<vmem>>, %arg3: memref<2x4xf32, #tpu.memory_space<vmem>>) attributes {dimension_semantics = [], scalar_prefetch = 0 : i64, scratch_operands = 0 : i64, tpu.core_type = #tpu.core_type<tc>} {
    %c0 = arith.constant 0 : index
    %c0_0 = arith.constant 0 : index
    %0 = vector.load %arg0[%c0, %c0_0] : memref<2x17xf32, #tpu.memory_space<vmem>>, vector<2x17xf32>
    %c0_1 = arith.constant 0 : index
    %c0_2 = arith.constant 0 : index
    %1 = vector.load %arg1[%c0_1, %c0_2] : memref<17x4xf32, #tpu.memory_space<vmem>>, vector<17x4xf32>
    %cst = arith.constant dense<0.000000e+00> : vector<2x4xf32>
    %2 = tpu.matmul %0, %1, %cst {dimension_numbers = #tpu.dot_dimension_numbers<[1], [0], [0], [1], [0, 0, 1, 1], [], []>} : vector<2x17xf32>, vector<17x4xf32>, vector<2x4xf32> -> vector<2x4xf32>
    %c0_3 = arith.constant 0 : index
    %c0_4 = arith.constant 0 : index
    %3 = vector.load %arg2[%c0_3, %c0_4] : memref<1x4xf32, #tpu.memory_space<vmem>>, vector<1x4xf32>
    %4 = vector.broadcast %3 : vector<1x4xf32> to vector<2x4xf32>
    %5 = arith.addf %2, %4 : vector<2x4xf32>
    %c0_5 = arith.constant 0 : index
    %c0_6 = arith.constant 0 : index
    %6 = vector.load %arg3[%c0_5, %c0_6] : memref<2x4xf32, #tpu.memory_space<vmem>>, vector<2x4xf32>
    tpu.vector_store %arg3[%c0_5, %c0_6], %5 {strides = array<i32>} : memref<2x4xf32, #tpu.memory_space<vmem>>, vector<2x4xf32>,
    return
  }
}

</mosaic_0001>

<llo_original>
// kernel: tpu_custom_call.1
$region0: #{tpu_custom_call.1}
  #allocation0 [shape = 'u32[]', space=smem, size = 0x4, offset = 0x4, fixed_abs, tag = 'smem constant byte address 0x4 - core index']
  #allocation1 [shape = 'u32[144,128]{1,0:T(1,128)}', space=vmem, size = 0x12000, scoped, tag = 'internal scratch']
  %s0 = inlined_call_operand.vmem [shape: f32[2,17], index: 0, kind: input, shape index: {}]
  %s1 = inlined_call_operand.vmem [shape: f32[17,4], index: 1, kind: input, shape index: {}]
  %s2 = inlined_call_operand.vmem [shape: f32[1,4], index: 2, kind: input, shape index: {}]
  %s3 = inlined_call_operand.hbm [shape: f32[2,4], index: 3, kind: output, shape index: {}]
  %s4 = sld [smem:[#allocation0]]
  $region22: #{tpu_custom_call.1} parent=0
    _
  %s6 = ssub.s32 1, %s4
  %s7 = scalar_select 0, %s6, %s4
  $region1: #{tpu_custom_call.1} parent=0
    #allocation2 [shape = 'u8[1024]{0}', space=vmem, size = 0x400, scoped, tag = 'output window, operand 0, single buffered']
    #allocation3 [shape = 's32[1]{0}', space=sflag, size = 0x4, scoped, tag = 'scoped memory for tpu_custom_call.1']
    %8 = vsyncpa [#allocation3], 0
    // Predicated region
    $region2: #{tpu_custom_call.1} parent=1 // pred_check
      _
    $region3: #{tpu_custom_call.1} parent=1 // pred_check_branch
      %10 = sbr.rel (0) target = $region5
    $region4: #{tpu_custom_call.1} parent=1 // pred_region
      _
    $region5: #{tpu_custom_call.1} parent=1 // pred_fallthru
      _
    // Predicated region
    $region6: #{tpu_custom_call.1} parent=1 // pred_check
      _
    $region7: #{tpu_custom_call.1} parent=1 // pred_check_branch
      %12 = sbr.rel (0) target = $region9
    $region8: #{tpu_custom_call.1} parent=1 // pred_region
      _
    $region9: #{tpu_custom_call.1} parent=1 // pred_fallthru
      _
    // Predicated region
    $region10: #{tpu_custom_call.1} parent=1 // pred_check
      _
    $region11: #{tpu_custom_call.1} parent=1 // pred_check_branch
      %14 = sbr.rel (0) target = $region13
    $region12: #{tpu_custom_call.1} parent=1 // pred_region
      _
    $region13: #{tpu_custom_call.1} parent=1 // pred_fallthru
      _
    %v15 = vld [vmem:[%s0] sm:$0x3]
    %v16 = vld [vmem:[%s1] sm:$0xff]
    %v17 = vld [vmem:[%s1 + $0x8] sm:$0xff]
    %v18 = vld [vmem:[%s1 + $0x10] sm:$0x1]
    %v19 = vld [vmem:[%s2] sm:$0x1]
    %v21 = vlaneseq
    %v22 = vshrl.u32 %v21, 7
    %v23 = vsub.s32 0, %v22
    %v24 = vrot.slane %v19, %v23
    %vm26 = vcmask 138240
    %v28 = vsel %vm26, %v15, 0
    %vm30 = vcmask 1040384
    %v32 = vsel %vm30, %v18, 0
    %34 = vmatprep.subr.mxu0 0.0
    %35 = vmatpush1.msra.mxu0 %v16
    %36 = vmatprep.subr.mxu0 0.0
    %37 = vmatpush1.msra.mxu0 %v17
    %38 = vmatprep.subr.mxu0 0.0
    %39 = vmatpush1.msra.mxu0 %v32
    %40 = vmatprep.subr.mxu0 0.0
    %41 = vmatpush1.msra.mxu0 0.0
    %42 = vmatprep.subr.mxu0 0.0
    %43 = vmatpush1.msra.mxu0 0.0
    %44 = vmatprep.subr.mxu0 0.0
    %45 = vmatpush1.msra.mxu0 0.0
    %46 = vmatprep.subr.mxu0 0.0
    %47 = vmatpush1.msra.mxu0 0.0
    %48 = vmatprep.subr.mxu0 0.0
    %49 = vmatpush1.msra.mxu0 0.0
    %50 = vmatprep.subr.mxu0 0.0
    %51 = vmatpush1.msra.mxu0 0.0
    %52 = vmatprep.subr.mxu0 0.0
    %53 = vmatpush1.msra.mxu0 0.0
    %54 = vmatprep.subr.mxu0 0.0
    %55 = vmatpush1.msra.mxu0 0.0
    %56 = vmatprep.subr.mxu0 0.0
    %57 = vmatpush1.msra.mxu0 0.0
    %58 = vmatprep.subr.mxu0 0.0
    %59 = vmatpush1.msra.mxu0 0.0
    %60 = vmatprep.subr.mxu0 0.0
    %61 = vmatpush1.msra.mxu0 0.0
    %62 = vmatprep.subr.mxu0 0.0
    %63 = vmatpush1.msra.mxu0 0.0
    %64 = vmatprep.subr.mxu0 0.0
    %65 = vmatpush1.msra.mxu0 0.0
    %66 = vmatprep.subr.mxu0 0.0
    %67 = vmatpush1.msra.mxu0 0.0
    %68 = vmatprep.subr.mxu0 0.0
    %69 = vmatpush1.msra.mxu0 0.0
    %70 = vmatprep.subr.mxu0 0.0
    %71 = vmatpush1.msra.mxu0 0.0
    %72 = vmatprep.subr.mxu0 0.0
    %73 = vmatpush1.msra.mxu0 0.0
    %74 = vmatprep.subr.mxu0 0.0
    %75 = vmatpush1.msra.mxu0 0.0
    %76 = vmatprep.subr.mxu0 0.0
    %77 = vmatpush1.msra.mxu0 0.0
    %78 = vmatprep.subr.mxu0 0.0
    %79 = vmatpush1.msra.mxu0 0.0
    %80 = vmatprep.subr.mxu0 0.0
    %81 = vmatpush1.msra.mxu0 0.0
    %82 = vmatprep.subr.mxu0 0.0
    %83 = vmatpush1.msra.mxu0 0.0
    %84 = vmatprep.subr.mxu0 0.0
    %85 = vmatpush1.msra.mxu0 0.0
    %86 = vmatprep.subr.mxu0 0.0
    %87 = vmatpush1.msra.mxu0 0.0
    %88 = vmatprep.subr.mxu0 0.0
    %89 = vmatpush1.msra.mxu0 0.0
    %90 = vmatprep.subr.mxu0 0.0
    %91 = vmatpush1.msra.mxu0 0.0
    %92 = vmatprep.subr.mxu0 0.0
    %93 = vmatpush1.msra.mxu0 0.0
    %94 = vmatprep.subr.mxu0 0.0
    %95 = vmatpush1.msra.mxu0 0.0
    %96 = vmatprep.subr.mxu0 0.0
    %97 = vmatpush1.msra.mxu0 0.0
    %98 = vmatprep.mubr.f32.mxu0 0.0
    %99 = vmatmul.mubr.f32.gmra.mrb[0].mxu0 %v28
    %v100 = vpop.f32.mrb[0].mxu0
    %v101 = vadd.f32 %v24, %v100
    %v102 = vpop.f32.mrb[0].mxu0
    %103 = vdwg.mxu0
    %vm104 = vcmask 25600
    %105 = vst.msk [vmem:[#allocation2] sm:$0x3] %vm104, %v101
    // Predicated region
    $region14: #{tpu_custom_call.1} parent=1 // pred_check
      _
    $region15: #{tpu_custom_call.1} parent=1 // pred_check_branch
      %107 = sbr.rel (0) target = $region17
    $region16: #{tpu_custom_call.1} parent=1 // pred_region
      %s109 = ssub.s32 32, 32
      %110 = vsyncadd [#allocation3], %s109
      %s112 = sshll.u32 [#allocation2], 4
      %s113 = int_to_ptr.vmem [resolvable:$true] %s112
      %115 = dma.vmem_to_hbm [thread:$0]  %s113, 32, %s3, [#allocation3]
    $region17: #{tpu_custom_call.1} parent=1 // pred_fallthru
      _
    // Predicated region
    $region18: #{tpu_custom_call.1} parent=1 // pred_check
      _
    $region19: #{tpu_custom_call.1} parent=1 // pred_check_branch
      %117 = sbr.rel (0) target = $region21
    $region20: #{tpu_custom_call.1} parent=1 // pred_region
      %118 = dma.done [#allocation3], 32
    $region21: #{tpu_custom_call.1} parent=1 // pred_fallthru
      _
    %119 = vsyncpa [#allocation3], 1

</llo_original>
